<compile_context>
chip_gen: v7x
topology: tpu7x:2x2x1
jax: 0.10.0
libtpu: 0.0.40
codegen_flags: <defaults>
</compile_context>

<pallas_src>
import functools

import jax
import jax.numpy as jnp
from jax.experimental import pallas as pl
from jax.experimental.pallas import tpu as pltpu


def _round_up(x, m):
    return ((x + m - 1) // m) * m


def _pix_texturize_kernel(view_ref, verts_ref, ix_ref, iy_ref, img_ref,
                          out_ref, acc_ref, *, H, W, sym):
    """One grid step: one (batch, vertex-tile, hw-tile) block.

    view_ref : (B, 16)          SMEM, flattened 4x4 view matrices
    verts_ref: (1, TV, 3)       VMEM f32 vertex tile
    ix_ref   : (1, THW)         VMEM f32 pixel column indices (grid-invariant)
    iy_ref   : (1, THW)         VMEM f32 pixel row indices
    img_ref  : (1, THW, Cpad)   VMEM bf16 image tile (channels last)
    out_ref  : (1, TV, Cpad)    VMEM f32 per-vertex features
    acc_ref  : (R*TV, Cpad)     VMEM f32 accumulator (R=2 when sym)
    """
    b = pl.program_id(0)
    hw_i = pl.program_id(2)

    @pl.when(hw_i == 0)
    def _init():
        acc_ref[...] = jnp.zeros_like(acc_ref)

    # ---- projection: scalar FMAs against rows x, y, w of the view matrix ----
    v = verts_ref[0]                       # (TV, 3)
    vx = v[:, 0:1]
    vy = v[:, 1:2]
    vz = v[:, 2:3]                         # (TV, 1) each

    def prow(r):
        return (view_ref[b, 4 * r + 0], view_ref[b, 4 * r + 1],
                view_ref[b, 4 * r + 2], view_ref[b, 4 * r + 3])

    p00, p01, p02, p03 = prow(0)
    p10, p11, p12, p13 = prow(1)
    p30, p31, p32, p33 = prow(3)           # z row is never needed

    cx = p00 * vx + p01 * vy + p02 * vz + p03      # (TV, 1) clip x
    cy = p10 * vx + p11 * vy + p12 * vz + p13      # (TV, 1) clip y
    cw = p30 * vx + p31 * vy + p32 * vz + p33      # (TV, 1) clip w

    # Guard w ~ 0 so degenerate vertices give huge-but-finite coords, which the
    # tent weights map to exactly zero (== grid_sample zero padding).
    cw = jnp.where(jnp.abs(cw) < 1e-6, 1e-6, cw)
    inv_w = pl.reciprocal(cw, approx=False)

    ndc_x = cx * inv_w
    ndc_y = cy * inv_w

    # grid_sample align_corners=False pixel coordinates.
    px = (ndc_x + 1.0) * (W * 0.5) - 0.5           # (TV, 1)
    py = (ndc_y + 1.0) * (H * 0.5) - 0.5           # (TV, 1)

    ixf = ix_ref[...]                              # (1, THW)
    iyf = iy_ref[...]                              # (1, THW)

    # Tent-form bilinear weights (identical to floor/frac form, incl. padding).
    wy = jnp.maximum(1.0 - jnp.abs(iyf - py), 0.0)         # (TV, THW)
    wx = jnp.maximum(1.0 - jnp.abs(ixf - px), 0.0)         # (TV, THW)

    if sym:
        # Mirror sampling reuses wy; stack along the vertex dim so a single
        # larger MXU matmul covers both samples.
        px_m = (W - 1.0) - px
        wx_m = jnp.maximum(1.0 - jnp.abs(ixf - px_m), 0.0)
        wmat = jnp.concatenate([wx * wy, wx_m * wy], axis=0)   # (2*TV, THW)
    else:
        wmat = wx * wy                                         # (TV, THW)

    acc_ref[...] += jnp.dot(wmat.astype(jnp.bfloat16), img_ref[0],
                            preferred_element_type=jnp.float32)

    @pl.when(hw_i == pl.num_programs(2) - 1)
    def _finalize():
        acc = acc_ref[...]
        if sym:
            tv = out_ref.shape[1]
            acc = 0.5 * (acc[:tv] + acc[tv:])
        out_ref[0] = acc.astype(out_ref.dtype)


def pix_texturize(verts, view, image, *, sym=False, tv=256, thw=2048):
    """Pixel-aligned vertex texturing.

    verts: (B, V, 3) f32 mesh vertices (equal V per mesh; packed output).
    view:  (B, 4, 4) f32 projection matrices.
    image: (B, C, H, W) f32 feature image (NCHW, PyTorch convention).
    Returns packed per-vertex features (B*V, C)  ~  (sumV, D).
    """
    B, V, _ = verts.shape
    _, C, H, W = image.shape
    HW = H * W

    # Tile sizes: vertex tile (sublane axis, multiple of 8), spatial tile
    # (lane axis, multiple of 128), channels padded to a lane-dense width.
    TV = min(tv, _round_up(V, 8))
    V_pad = _round_up(V, TV)
    THW = min(thw, _round_up(HW, 128))
    HW_pad = _round_up(HW, THW)
    C_pad = max(128, _round_up(C, 128))

    verts_p = jnp.pad(verts.astype(jnp.float32),
                      ((0, 0), (0, V_pad - V), (0, 0)))
    view_flat = view.astype(jnp.float32).reshape(B, 16)

    # NCHW -> (B, HW, C) so sampling is a matmul; pad spatial (zeros) and
    # channels (zeros), then cast to bf16 for the MXU.
    img = jnp.transpose(image, (0, 2, 3, 1)).reshape(B, HW, C)
    img = jnp.pad(img, ((0, 0), (0, HW_pad - HW), (0, C_pad - C)))
    img = img.astype(jnp.bfloat16)

    # Precomputed pixel indices (grid-invariant inputs); padded taps get a
    # large sentinel so their tent weight is exactly zero.
    idx = jnp.arange(HW, dtype=jnp.int32)
    ixf = (idx % W).astype(jnp.float32)
    iyf = (idx // W).astype(jnp.float32)
    ixf = jnp.pad(ixf, (0, HW_pad - HW), constant_values=-1e4)[None, :]
    iyf = jnp.pad(iyf, (0, HW_pad - HW), constant_values=-1e4)[None, :]

    n_v = V_pad // TV
    n_hw = HW_pad // THW
    R = 2 if sym else 1

    out = pl.pallas_call(
        functools.partial(_pix_texturize_kernel, H=H, W=W, sym=sym),
        out_shape=jax.ShapeDtypeStruct((B, V_pad, C_pad), jnp.float32),
        grid_spec=pltpu.PrefetchScalarGridSpec(
            num_scalar_prefetch=0,
            grid=(B, n_v, n_hw),
            in_specs=[
                # Whole view table lives in SMEM (scalar reads in-kernel).
                pl.BlockSpec(memory_space=pltpu.MemorySpace.SMEM),
                pl.BlockSpec((1, TV, 3), lambda b, vi, hi: (b, vi, 0)),
                pl.BlockSpec((1, THW), lambda b, vi, hi: (0, hi)),
                pl.BlockSpec((1, THW), lambda b, vi, hi: (0, hi)),
                pl.BlockSpec((1, THW, C_pad), lambda b, vi, hi: (b, hi, 0)),
            ],
            out_specs=pl.BlockSpec((1, TV, C_pad),
                                   lambda b, vi, hi: (b, vi, 0)),
            scratch_shapes=[pltpu.VMEM((R * TV, C_pad), jnp.float32)],
        ),
        compiler_params=pltpu.CompilerParams(
            dimension_semantics=("parallel", "parallel", "arbitrary"),
            vmem_limit_bytes=48 * 1024 * 1024,
        ),
    )(view_flat, verts_p, ixf, iyf, img)

    return out[:, :V, :C].reshape(B * V, C)


def _reference(verts, view, image, *, sym=False):
    """Pure-JAX reference using the same tent-weight / bf16-matmul math."""
    B, V, _ = verts.shape
    _, C, H, W = image.shape
    HW = H * W
    img = jnp.transpose(image, (0, 2, 3, 1)).reshape(B, HW, C)
    img = img.astype(jnp.bfloat16)
    idx = jnp.arange(HW, dtype=jnp.int32)
    ixf = (idx % W).astype(jnp.float32)[None, :]
    iyf = (idx // W).astype(jnp.float32)[None, :]

    def one(v, P, im):
        vh = jnp.concatenate([v, jnp.ones((V, 1), v.dtype)], -1)
        proj = vh @ P.T
        w = proj[:, 3:4]
        w = jnp.where(jnp.abs(w) < 1e-6, 1e-6, w)
        nx = proj[:, 0:1] / w
        ny = proj[:, 1:2] / w
        px = (nx + 1.0) * (W * 0.5) - 0.5
        py = (ny + 1.0) * (H * 0.5) - 0.5
        wy = jnp.maximum(1.0 - jnp.abs(iyf - py), 0.0)

        def samp(px_):
            wx = jnp.maximum(1.0 - jnp.abs(ixf - px_), 0.0)
            return jnp.dot((wx * wy).astype(jnp.bfloat16), im,
                           preferred_element_type=jnp.float32)

        f = samp(px)
        if sym:
            f = 0.5 * (f + samp((W - 1.0) - px))
        return f

    return jax.vmap(one)(verts, view, img).reshape(B * V, C)


if __name__ == "__main__":
    B, V, C, H, W = 2, 64, 4, 16, 16

    key = jax.random.PRNGKey(0)
    k_v, k_img = jax.random.split(key)

    # Vertices roughly inside the view frustum.
    verts = jax.random.uniform(k_v, (B, V, 3), jnp.float32,
                               minval=-0.8, maxval=0.8)
    # Feature image, NCHW like the PyTorch module expects for `image`.
    image = jax.random.normal(k_img, (B, C, H, W), jnp.float32)
    # Deterministic per-batch view/projection matrices.
    view = jnp.stack([
        jnp.diag(jnp.array([1.0, 1.0, 1.0, 1.0], jnp.float32)),
        jnp.diag(jnp.array([0.9, 1.1, 1.0, 1.0], jnp.float32)),
    ], axis=0)

    for sym in (False, True):
        out = jax.block_until_ready(pix_texturize(verts, view, image, sym=sym))
        ref = _reference(verts, view, image, sym=sym)
        assert out.shape == (B * V, C)
        assert jnp.allclose(out, ref, atol=5e-2), f"mismatch vs reference (sym={sym})"

    print("KERNEL_OK")
</pallas_src>

<mosaic_0001>
module attributes {stable_mosaic.version = 11 : i64} {
  func.func @_pix_texturize_kernel(%arg0: i32, %arg1: i32, %arg2: i32, %arg3: memref<2x16xf32, #tpu.memory_space<smem>>, %arg4: memref<1x64x3xf32, #tpu.memory_space<vmem>>, %arg5: memref<1x256xf32, #tpu.memory_space<vmem>>, %arg6: memref<1x256xf32, #tpu.memory_space<vmem>>, %arg7: memref<1x256x128xbf16, #tpu.memory_space<vmem>>, %arg8: memref<1x64x128xf32, #tpu.memory_space<vmem>>, %arg9: memref<64x128xf32, #tpu.memory_space<vmem>>) attributes {dimension_semantics = [#tpu.dimension_semantics<parallel>, #tpu.dimension_semantics<parallel>, #tpu.dimension_semantics<arbitrary>], iteration_bounds = array<i64: 2, 1, 1>, scalar_prefetch = 0 : i64, scratch_operands = 1 : i64, tpu.core_type = #tpu.core_type<tc>, window_params = [{transform_indices = @transform_0, window_bounds = array<i64: 2, 16>}, {transform_indices = @transform_1, window_bounds = array<i64: 1, 64, 3>}, {transform_indices = @transform_2, window_bounds = array<i64: 1, 256>}, {transform_indices = @transform_3, window_bounds = array<i64: 1, 256>}, {transform_indices = @transform_4, window_bounds = array<i64: 1, 256, 128>}, {transform_indices = @transform_5, window_bounds = array<i64: 1, 64, 128>}]} {
    %c0_i32 = arith.constant 0 : i32
    %0 = arith.cmpi eq, %arg2, %c0_i32 : i32
    %1 = arith.extui %0 : i1 to i32
    %c0_i32_0 = arith.constant 0 : i32
    %2 = arith.cmpi ne, %1, %c0_i32_0 : i32
    scf.if %2 {
      %cst_29 = arith.constant 0.000000e+00 : f32
      %111 = vector.broadcast %cst_29 : f32 to vector<64x128xf32>
      %c0_30 = arith.constant 0 : index
      %c0_31 = arith.constant 0 : index
      %112 = vector.load %arg9[%c0_30, %c0_31] : memref<64x128xf32, #tpu.memory_space<vmem>>, vector<64x128xf32>
      tpu.vector_store %arg9[%c0_30, %c0_31], %111 {strides = array<i32>} : memref<64x128xf32, #tpu.memory_space<vmem>>, vector<64x128xf32>,
    } else {
    }
    %c0 = arith.constant 0 : index
    %c0_1 = arith.constant 0 : index
    %c0_2 = arith.constant 0 : index
    %3 = vector.load %arg4[%c0, %c0_1, %c0_2] : memref<1x64x3xf32, #tpu.memory_space<vmem>>, vector<1x64x3xf32>
    %4 = vector.shape_cast %3 : vector<1x64x3xf32> to vector<64x3xf32>
    %5 = vector.extract_strided_slice %4 {offsets = [0, 0], sizes = [64, 1], strides = [1, 1]} : vector<64x3xf32> to vector<64x1xf32>
    %6 = vector.extract_strided_slice %4 {offsets = [0, 1], sizes = [64, 1], strides = [1, 1]} : vector<64x3xf32> to vector<64x1xf32>
    %7 = vector.extract_strided_slice %4 {offsets = [0, 2], sizes = [64, 1], strides = [1, 1]} : vector<64x3xf32> to vector<64x1xf32>
    %8 = arith.index_cast %arg0 : i32 to index
    %c0_3 = arith.constant 0 : index
    %9 = memref.load %arg3[%8, %c0_3] : memref<2x16xf32, #tpu.memory_space<smem>>
    %10 = arith.index_cast %arg0 : i32 to index
    %c1 = arith.constant 1 : index
    %11 = memref.load %arg3[%10, %c1] : memref<2x16xf32, #tpu.memory_space<smem>>
    %12 = arith.index_cast %arg0 : i32 to index
    %c2 = arith.constant 2 : index
    %13 = memref.load %arg3[%12, %c2] : memref<2x16xf32, #tpu.memory_space<smem>>
    %14 = arith.index_cast %arg0 : i32 to index
    %c3 = arith.constant 3 : index
    %15 = memref.load %arg3[%14, %c3] : memref<2x16xf32, #tpu.memory_space<smem>>
    %16 = arith.index_cast %arg0 : i32 to index
    %c4 = arith.constant 4 : index
    %17 = memref.load %arg3[%16, %c4] : memref<2x16xf32, #tpu.memory_space<smem>>
    %18 = arith.index_cast %arg0 : i32 to index
    %c5 = arith.constant 5 : index
    %19 = memref.load %arg3[%18, %c5] : memref<2x16xf32, #tpu.memory_space<smem>>
    %20 = arith.index_cast %arg0 : i32 to index
    %c6 = arith.constant 6 : index
    %21 = memref.load %arg3[%20, %c6] : memref<2x16xf32, #tpu.memory_space<smem>>
    %22 = arith.index_cast %arg0 : i32 to index
    %c7 = arith.constant 7 : index
    %23 = memref.load %arg3[%22, %c7] : memref<2x16xf32, #tpu.memory_space<smem>>
    %24 = arith.index_cast %arg0 : i32 to index
    %c12 = arith.constant 12 : index
    %25 = memref.load %arg3[%24, %c12] : memref<2x16xf32, #tpu.memory_space<smem>>
    %26 = arith.index_cast %arg0 : i32 to index
    %c13 = arith.constant 13 : index
    %27 = memref.load %arg3[%26, %c13] : memref<2x16xf32, #tpu.memory_space<smem>>
    %28 = arith.index_cast %arg0 : i32 to index
    %c14 = arith.constant 14 : index
    %29 = memref.load %arg3[%28, %c14] : memref<2x16xf32, #tpu.memory_space<smem>>
    %30 = arith.index_cast %arg0 : i32 to index
    %c15 = arith.constant 15 : index
    %31 = memref.load %arg3[%30, %c15] : memref<2x16xf32, #tpu.memory_space<smem>>
    %32 = vector.broadcast %9 : f32 to vector<64x1xf32>
    %33 = arith.mulf %32, %5 : vector<64x1xf32>
    %34 = vector.broadcast %11 : f32 to vector<64x1xf32>
    %35 = arith.mulf %34, %6 : vector<64x1xf32>
    %36 = arith.addf %33, %35 : vector<64x1xf32>
    %37 = vector.broadcast %13 : f32 to vector<64x1xf32>
    %38 = arith.mulf %37, %7 : vector<64x1xf32>
    %39 = arith.addf %36, %38 : vector<64x1xf32>
    %40 = vector.broadcast %15 : f32 to vector<64x1xf32>
    %41 = arith.addf %39, %40 : vector<64x1xf32>
    %42 = vector.broadcast %17 : f32 to vector<64x1xf32>
    %43 = arith.mulf %42, %5 : vector<64x1xf32>
    %44 = vector.broadcast %19 : f32 to vector<64x1xf32>
    %45 = arith.mulf %44, %6 : vector<64x1xf32>
    %46 = arith.addf %43, %45 : vector<64x1xf32>
    %47 = vector.broadcast %21 : f32 to vector<64x1xf32>
    %48 = arith.mulf %47, %7 : vector<64x1xf32>
    %49 = arith.addf %46, %48 : vector<64x1xf32>
    %50 = vector.broadcast %23 : f32 to vector<64x1xf32>
    %51 = arith.addf %49, %50 : vector<64x1xf32>
    %52 = vector.broadcast %25 : f32 to vector<64x1xf32>
    %53 = arith.mulf %52, %5 : vector<64x1xf32>
    %54 = vector.broadcast %27 : f32 to vector<64x1xf32>
    %55 = arith.mulf %54, %6 : vector<64x1xf32>
    %56 = arith.addf %53, %55 : vector<64x1xf32>
    %57 = vector.broadcast %29 : f32 to vector<64x1xf32>
    %58 = arith.mulf %57, %7 : vector<64x1xf32>
    %59 = arith.addf %56, %58 : vector<64x1xf32>
    %60 = vector.broadcast %31 : f32 to vector<64x1xf32>
    %61 = arith.addf %59, %60 : vector<64x1xf32>
    %62 = math.absf %61 : vector<64x1xf32>
    %cst = arith.constant 9.99999997E-7 : f32
    %63 = vector.broadcast %cst : f32 to vector<64x1xf32>
    %64 = arith.cmpf olt, %62, %63 : vector<64x1xf32>
    %cst_4 = arith.constant 9.99999997E-7 : f32
    %65 = vector.broadcast %cst_4 : f32 to vector<64x1xf32>
    %66 = arith.select %64, %65, %61 : vector<64x1xi1>, vector<64x1xf32>
    %67 = tpu.reciprocal %66 : vector<64x1xf32> -> vector<64x1xf32>
    %68 = arith.mulf %41, %67 : vector<64x1xf32>
    %69 = arith.mulf %51, %67 : vector<64x1xf32>
    %cst_5 = arith.constant 1.000000e+00 : f32
    %70 = vector.broadcast %cst_5 : f32 to vector<64x1xf32>
    %71 = arith.addf %68, %70 : vector<64x1xf32>
    %cst_6 = arith.constant 8.000000e+00 : f32
    %72 = vector.broadcast %cst_6 : f32 to vector<64x1xf32>
    %73 = arith.mulf %71, %72 : vector<64x1xf32>
    %cst_7 = arith.constant 5.000000e-01 : f32
    %74 = vector.broadcast %cst_7 : f32 to vector<64x1xf32>
    %75 = arith.subf %73, %74 : vector<64x1xf32>
    %cst_8 = arith.constant 1.000000e+00 : f32
    %76 = vector.broadcast %cst_8 : f32 to vector<64x1xf32>
    %77 = arith.addf %69, %76 : vector<64x1xf32>
    %cst_9 = arith.constant 8.000000e+00 : f32
    %78 = vector.broadcast %cst_9 : f32 to vector<64x1xf32>
    %79 = arith.mulf %77, %78 : vector<64x1xf32>
    %cst_10 = arith.constant 5.000000e-01 : f32
    %80 = vector.broadcast %cst_10 : f32 to vector<64x1xf32>
    %81 = arith.subf %79, %80 : vector<64x1xf32>
    %c0_11 = arith.constant 0 : index
    %c0_12 = arith.constant 0 : index
    %82 = vector.load %arg5[%c0_11, %c0_12] : memref<1x256xf32, #tpu.memory_space<vmem>>, vector<1x256xf32>
    %c0_13 = arith.constant 0 : index
    %c0_14 = arith.constant 0 : index
    %83 = vector.load %arg6[%c0_13, %c0_14] : memref<1x256xf32, #tpu.memory_space<vmem>>, vector<1x256xf32>
    %84 = vector.broadcast %83 : vector<1x256xf32> to vector<64x256xf32>
    %85 = vector.broadcast %81 : vector<64x1xf32> to vector<64x256xf32>
    %86 = arith.subf %84, %85 : vector<64x256xf32>
    %87 = math.absf %86 : vector<64x256xf32>
    %cst_15 = arith.constant 1.000000e+00 : f32
    %88 = vector.broadcast %cst_15 : f32 to vector<64x256xf32>
    %89 = arith.subf %88, %87 : vector<64x256xf32>
    %cst_16 = arith.constant 0.000000e+00 : f32
    %90 = vector.broadcast %cst_16 : f32 to vector<64x256xf32>
    %91 = arith.maximumf %89, %90 : vector<64x256xf32>
    %92 = vector.broadcast %82 : vector<1x256xf32> to vector<64x256xf32>
    %93 = vector.broadcast %75 : vector<64x1xf32> to vector<64x256xf32>
    %94 = arith.subf %92, %93 : vector<64x256xf32>
    %95 = math.absf %94 : vector<64x256xf32>
    %cst_17 = arith.constant 1.000000e+00 : f32
    %96 = vector.broadcast %cst_17 : f32 to vector<64x256xf32>
    %97 = arith.subf %96, %95 : vector<64x256xf32>
    %cst_18 = arith.constant 0.000000e+00 : f32
    %98 = vector.broadcast %cst_18 : f32 to vector<64x256xf32>
    %99 = arith.maximumf %97, %98 : vector<64x256xf32>
    %100 = arith.mulf %99, %91 : vector<64x256xf32>
    %c0_19 = arith.constant 0 : index
    %c0_20 = arith.constant 0 : index
    %101 = vector.load %arg9[%c0_19, %c0_20] : memref<64x128xf32, #tpu.memory_space<vmem>>, vector<64x128xf32>
    %102 = arith.truncf %100 : vector<64x256xf32> to vector<64x256xbf16>
    %c0_21 = arith.constant 0 : index
    %c0_22 = arith.constant 0 : index
    %c0_23 = arith.constant 0 : index
    %103 = vector.load %arg7[%c0_21, %c0_22, %c0_23] : memref<1x256x128xbf16, #tpu.memory_space<vmem>>, vector<1x256x128xbf16>
    %104 = vector.shape_cast %103 : vector<1x256x128xbf16> to vector<256x128xbf16>
    %cst_24 = arith.constant dense<0.000000e+00> : vector<64x128xf32>
    %105 = tpu.matmul %102, %104, %cst_24 {dimension_numbers = #tpu.dot_dimension_numbers<[1], [0], [0], [1], [0, 0, 1, 1], [], []>} : vector<64x256xbf16>, vector<256x128xbf16>, vector<64x128xf32> -> vector<64x128xf32>
    %106 = arith.addf %101, %105 : vector<64x128xf32>
    %c0_25 = arith.constant 0 : index
    %c0_26 = arith.constant 0 : index
    %107 = vector.load %arg9[%c0_25, %c0_26] : memref<64x128xf32, #tpu.memory_space<vmem>>, vector<64x128xf32>
    tpu.vector_store %arg9[%c0_25, %c0_26], %106 {strides = array<i32>} : memref<64x128xf32, #tpu.memory_space<vmem>>, vector<64x128xf32>,
    %c0_i32_27 = arith.constant 0 : i32
    %108 = arith.cmpi eq, %arg2, %c0_i32_27 : i32
    %109 = arith.extui %108 : i1 to i32
    %c0_i32_28 = arith.constant 0 : i32
    %110 = arith.cmpi ne, %109, %c0_i32_28 : i32
    scf.if %110 {
      %c0_29 = arith.constant 0 : index
      %c0_30 = arith.constant 0 : index
      %111 = vector.load %arg9[%c0_29, %c0_30] : memref<64x128xf32, #tpu.memory_space<vmem>>, vector<64x128xf32>
      %c0_31 = arith.constant 0 : index
      %c0_32 = arith.constant 0 : index
      %c0_33 = arith.constant 0 : index
      %112 = vector.load %arg8[%c0_31, %c0_32, %c0_33] : memref<1x64x128xf32, #tpu.memory_space<vmem>>, vector<1x64x128xf32>
      %113 = vector.shape_cast %112 : vector<1x64x128xf32> to vector<64x128xf32>
      %114 = vector.shape_cast %111 : vector<64x128xf32> to vector<1x64x128xf32>
      tpu.vector_store %arg8[%c0_31, %c0_32, %c0_33], %114 {strides = array<i32>} : memref<1x64x128xf32, #tpu.memory_space<vmem>>, vector<1x64x128xf32>,
    } else {
    }
    return
  }
  func.func @transform_0(%arg0: i32, %arg1: i32, %arg2: i32) -> (i32, i32) {
    %c0_i32 = arith.constant 0 : i32
    %c0_i32_0 = arith.constant 0 : i32
    %c0_i32_1 = arith.constant 0 : i32
    return %c0_i32, %c0_i32_0 : i32, i32
  }
  func.func @transform_1(%arg0: i32, %arg1: i32, %arg2: i32) -> (i32, i32, i32) {
    %c0_i32 = arith.constant 0 : i32
    %c0_i32_0 = arith.constant 0 : i32
    return %arg0, %arg1, %c0_i32 : i32, i32, i32
  }
  func.func @transform_2(%arg0: i32, %arg1: i32, %arg2: i32) -> (i32, i32) {
    %c0_i32 = arith.constant 0 : i32
    %c0_i32_0 = arith.constant 0 : i32
    return %c0_i32, %arg2 : i32, i32
  }
  func.func @transform_3(%arg0: i32, %arg1: i32, %arg2: i32) -> (i32, i32) {
    %c0_i32 = arith.constant 0 : i32
    %c0_i32_0 = arith.constant 0 : i32
    return %c0_i32, %arg2 : i32, i32
  }
  func.func @transform_4(%arg0: i32, %arg1: i32, %arg2: i32) -> (i32, i32, i32) {
    %c0_i32 = arith.constant 0 : i32
    %c0_i32_0 = arith.constant 0 : i32
    return %arg0, %arg2, %c0_i32 : i32, i32, i32
  }
  func.func @transform_5(%arg0: i32, %arg1: i32, %arg2: i32) -> (i32, i32, i32) {
    %c0_i32 = arith.constant 0 : i32
    %c0_i32_0 = arith.constant 0 : i32
    return %arg0, %arg1, %c0_i32 : i32, i32, i32
  }
}

</mosaic_0001>

<llo_original>
// kernel: tpu_custom_call.1
$region0: #{tpu_custom_call.1}
  #allocation0 [shape = 'u32[]', space=smem, size = 0x4, offset = 0x4, fixed_abs, tag = 'smem constant byte address 0x4 - core index']
  #allocation1 [shape = 'u32[144,128]{1,0:T(1,128)}', space=vmem, size = 0x12000, scoped, tag = 'internal scratch']
  #allocation2 [shape = 'f32[64,128]{1,0:T(8,128)}', space=vmem, size = 0x8000, scoped, tag = 'scratch operand']
  %s0 = inlined_call_operand.vmem [shape: f32[2,16], index: 0, kind: input, shape index: {}]
  %s1 = inlined_call_operand.vmem [shape: f32[2,64,3], index: 1, kind: input, shape index: {}]
  %s2 = inlined_call_operand.vmem [shape: f32[1,256], index: 2, kind: input, shape index: {}]
  %s3 = inlined_call_operand.vmem [shape: f32[1,256], index: 3, kind: input, shape index: {}]
  %s4 = inlined_call_operand.hbm [shape: bf16[2,256,128], index: 4, kind: input, shape index: {}]
  %s5 = inlined_call_operand.hbm [shape: f32[2,64,128], index: 5, kind: output, shape index: {}]
  %s6 = sld [smem:[#allocation0]]
  $region69: #{tpu_custom_call.1} parent=0
    _
  %s8 = ssub.s32 1, %s6
  %s9 = scalar_select 0, %s8, %s6
  $region1: #{tpu_custom_call.1} parent=0
    #allocation3 [shape = 'u8[1024]{0}', space=smem, size = 0x400, scoped, tag = 'input window, operand 0, single buffered']
    #allocation4 [shape = 's32[2]{0}', space=sflag, size = 0x8, scoped, tag = 'scoped memory for tpu_custom_call.1']
    #allocation5 [shape = 's32[2]{0}', space=sflag, size = 0x8, scoped, tag = 'scoped memory for tpu_custom_call.1']
    #allocation6 [shape = 's32[2]{0}', space=sflag, size = 0x8, scoped, tag = 'scoped memory for tpu_custom_call.1']
    #allocation7 [shape = 'u8[131072]{0}', space=vmem, size = 0x20000, scoped, tag = 'input window, operand 4']
    #allocation8 [shape = 'u8[65536]{0}', space=vmem, size = 0x10000, scoped, tag = 'output window, operand 0']
    %10 = vsyncpa [#allocation6], 0
    %11 = vsyncpa [#allocation4], 0
    %s12 = scalar_lea.sflag [#allocation4], 1
    %13 = vsyncpa %s12, 0
    %14 = vsyncpa [#allocation5], 0
    %s15 = scalar_lea.sflag [#allocation5], 1
    %16 = vsyncpa %s15, 0
    loop: start=0, step=1, limit=4
    $region2: #{tpu_custom_call.1} parent=1 // loop_pre_header
      _
    $region3: #{tpu_custom_call.1} parent=1 // loop_header
      %s18 = sphi 0, %s22
      %p19 = scmp.ge.s32.totalorder %s18, 4
      %s25 = sphi 0, %s44
      %s26 = sphi 0, %s40
      %s27 = sphi 0, %s36
      %s28 = sphi 0, %s25
      %s29 = sphi 0, %s26
      %s30 = sphi 0, %s27
      %s31 = sphi 0, %s28
      %s32 = sphi 0, %s29
      %s33 = sphi 0, %s30
      %s45 = sphi 0, %s45
      %s47 = sphi 0, %s45
      %s48 = sphi 0, %s47
      %s62 = sphi 0, %s48
      %s70 = sphi 0, %s72
      %s73 = sphi 0, %s70
      %s74 = sphi 0, %s73
      %s90 = sphi 0, %s74
      %s96 = sphi 0, %s98
      %s99 = sphi 0, %s96
      %s100 = sphi 0, %s99
      %s116 = sphi 0, %s100
      %s122 = sphi 0, %s124
      %s125 = sphi 0, %s122
      %s126 = sphi 0, %s125
      %s142 = sphi 0, %s126
      %s150 = sphi 0, %s152
      %s153 = sphi 0, %s150
      %s154 = sphi 0, %s153
      %s170 = sphi 0, %s154
      %s178 = sphi 0, %s180
      %s181 = sphi 0, %s178
      %s182 = sphi 0, %s181
      %s198 = sphi 0, %s182
    $region4: #{tpu_custom_call.1} parent=1 // loop_header_branch
      %21 = sbr.rel (%p19) target = $region8
    $region5: #{tpu_custom_call.1} parent=1 // loop_body
      %s23 = ssub.s32 %s18, 1
      %s24 = ssub.s32 %s18, 2
      %s34 = sadd.s32 1, %s27
      %p35 = scmp.ge.s32.totalorder %s34, 1
      %s36 = scalar_select %p35, 0, %s34
      %s37 = sadd.s32 1, %s26
      %s38 = scalar_select %p35, %s37, %s26
      %p39 = scmp.ge.s32.totalorder %s38, 1
      %s40 = scalar_select %p39, 0, %s38
      %s41 = sadd.s32 1, %s25
      %s42 = scalar_select %p39, %s41, %s25
      %p43 = scmp.ge.s32.totalorder %s42, 2
      %s44 = scalar_select %p43, 0, %s42
      %s46 = sadd.s32 %s45, 1
      %p49 = scmp.eq.s32.totalorder %s18, 1
      %p50 = scmp.ne.s32.totalorder %s45, %s47
      %p51 = scmp.eq.s32.totalorder %s18, 0
      %p52 = por %p50, %p51
      %p53 = scmp.ne.s32.totalorder %s45, %s47
      %p54 = scmp.eq.s32.totalorder %s23, 1
      %p55 = por %p53, %p54
      %p56 = scmp.ne.s32.totalorder %s47, %s48
      %p57 = scmp.eq.s32.totalorder %s23, 0
      %p58 = por %p56, %p57
      %p59 = scmp.ne.s32.totalorder %s47, %s48
      %p60 = scmp.eq.s32.totalorder %s24, 1
      %p61 = por %p59, %p60
      %p63 = scmp.ne.s32.totalorder %s48, %s62
      %p64 = scmp.eq.s32.totalorder %s24, 0
      %p65 = por %p63, %p64
      %s66 = ssub.s32 %s25, %s44
      %s67 = ssub.s32 %s26, %s40
      %s68 = sor.u32 %s66, %s67
      %p69 = scmp.eq.s32.totalorder %s68, 0
      %s71 = sadd.s32 %s70, 1
      %s72 = scalar_select %p69, %s70, %s71
      %p75 = pneg %p69
      %p76 = scmp.eq.s32.totalorder %s18, 1
      %p77 = por %p75, %p76
      %p78 = scmp.ne.s32.totalorder %s70, %s73
      %p79 = scmp.eq.s32.totalorder %s18, 0
      %p80 = por %p78, %p79
      %p81 = scmp.ne.s32.totalorder %s70, %s73
      %p82 = scmp.eq.s32.totalorder %s23, 1
      %p83 = por %p81, %p82
      %p84 = scmp.ne.s32.totalorder %s73, %s74
      %p85 = scmp.eq.s32.totalorder %s23, 0
      %p86 = por %p84, %p85
      %p87 = scmp.ne.s32.totalorder %s73, %s74
      %p88 = scmp.eq.s32.totalorder %s24, 1
      %p89 = por %p87, %p88
      %p91 = scmp.ne.s32.totalorder %s74, %s90
      %p92 = scmp.eq.s32.totalorder %s24, 0
      %p93 = por %p91, %p92
      %s94 = ssub.s32 %s27, %s36
      %p95 = scmp.eq.s32.totalorder %s94, 0
      %s97 = sadd.s32 %s96, 1
      %s98 = scalar_select %p95, %s96, %s97
      %p101 = pneg %p95
      %p102 = scmp.eq.s32.totalorder %s18, 1
      %p103 = por %p101, %p102
      %p104 = scmp.ne.s32.totalorder %s96, %s99
      %p105 = scmp.eq.s32.totalorder %s18, 0
      %p106 = por %p104, %p105
      %p107 = scmp.ne.s32.totalorder %s96, %s99
      %p108 = scmp.eq.s32.totalorder %s23, 1
      %p109 = por %p107, %p108
      %p110 = scmp.ne.s32.totalorder %s99, %s100
      %p111 = scmp.eq.s32.totalorder %s23, 0
      %p112 = por %p110, %p111
      %p113 = scmp.ne.s32.totalorder %s99, %s100
      %p114 = scmp.eq.s32.totalorder %s24, 1
      %p115 = por %p113, %p114
      %p117 = scmp.ne.s32.totalorder %s100, %s116
      %p118 = scmp.eq.s32.totalorder %s24, 0
      %p119 = por %p117, %p118
      %s120 = ssub.s32 %s27, %s36
      %p121 = scmp.eq.s32.totalorder %s120, 0
      %s123 = sadd.s32 %s122, 1
      %s124 = scalar_select %p121, %s122, %s123
      %p127 = pneg %p121
      %p128 = scmp.eq.s32.totalorder %s18, 1
      %p129 = por %p127, %p128
      %p130 = scmp.ne.s32.totalorder %s122, %s125
      %p131 = scmp.eq.s32.totalorder %s18, 0
      %p132 = por %p130, %p131
      %p133 = scmp.ne.s32.totalorder %s122, %s125
      %p134 = scmp.eq.s32.totalorder %s23, 1
      %p135 = por %p133, %p134
      %p136 = scmp.ne.s32.totalorder %s125, %s126
      %p137 = scmp.eq.s32.totalorder %s23, 0
      %p138 = por %p136, %p137
      %p139 = scmp.ne.s32.totalorder %s125, %s126
      %p140 = scmp.eq.s32.totalorder %s24, 1
      %p141 = por %p139, %p140
      %p143 = scmp.ne.s32.totalorder %s126, %s142
      %p144 = scmp.eq.s32.totalorder %s24, 0
      %p145 = por %p143, %p144
      %s146 = ssub.s32 %s25, %s44
      %s147 = ssub.s32 %s27, %s36
      %s148 = sor.u32 %s146, %s147
      %p149 = scmp.eq.s32.totalorder %s148, 0
      %s151 = sadd.s32 %s150, 1
      %s152 = scalar_select %p149, %s150, %s151
      %p155 = pneg %p149
      %p156 = scmp.eq.s32.totalorder %s18, 1
      %p157 = por %p155, %p156
      %p158 = scmp.ne.s32.totalorder %s150, %s153
      %p159 = scmp.eq.s32.totalorder %s18, 0
      %p160 = por %p158, %p159
      %p161 = scmp.ne.s32.totalorder %s150, %s153
      %p162 = scmp.eq.s32.totalorder %s23, 1
      %p163 = por %p161, %p162
      %p164 = scmp.ne.s32.totalorder %s153, %s154
      %p165 = scmp.eq.s32.totalorder %s23, 0
      %p166 = por %p164, %p165
      %p167 = scmp.ne.s32.totalorder %s153, %s154
      %p168 = scmp.eq.s32.totalorder %s24, 1
      %p169 = por %p167, %p168
      %p171 = scmp.ne.s32.totalorder %s154, %s170
      %p172 = scmp.eq.s32.totalorder %s24, 0
      %p173 = por %p171, %p172
      %s174 = ssub.s32 %s25, %s44
      %s175 = ssub.s32 %s26, %s40
      %s176 = sor.u32 %s174, %s175
      %p177 = scmp.eq.s32.totalorder %s176, 0
      %s179 = sadd.s32 %s178, 1
      %s180 = scalar_select %p177, %s178, %s179
      %p183 = pneg %p177
      %p184 = scmp.eq.s32.totalorder %s18, 1
      %p185 = por %p183, %p184
      %p186 = scmp.ne.s32.totalorder %s178, %s181
      %p187 = scmp.eq.s32.totalorder %s18, 0
      %p188 = por %p186, %p187
      %p189 = scmp.ne.s32.totalorder %s178, %s181
      %p190 = scmp.eq.s32.totalorder %s23, 1
      %p191 = por %p189, %p190
      %p192 = scmp.ne.s32.totalorder %s181, %s182
      %p193 = scmp.eq.s32.totalorder %s23, 0
      %p194 = por %p192, %p193
      %p195 = scmp.ne.s32.totalorder %s181, %s182
      %p196 = scmp.eq.s32.totalorder %s24, 1
      %p197 = por %p195, %p196
      %p199 = scmp.ne.s32.totalorder %s182, %s198
      %p200 = scmp.eq.s32.totalorder %s24, 0
      %p201 = por %p199, %p200
      %p202 = scmp.le.s32.totalorder 1, %s18
      %p203 = scmp.lt.s32.totalorder %s18, 3
      %p204 = pnand %p202, %p203
      %p205 = pneg %p204
      // Predicated region
      $region9: #{tpu_custom_call.1} parent=5 // pred_check
        _
      $region10: #{tpu_custom_call.1} parent=5 // pred_check_branch
        %207 = sbr.rel (%p204) target = $region12
      $region11: #{tpu_custom_call.1} parent=5 // pred_region
        %s208 = ssub.s32 %s18, 1
        // Predicated region
        $region13: #{tpu_custom_call.1} parent=11 // pred_check
          %p209 = pneg %p58
        $region14: #{tpu_custom_call.1} parent=11 // pred_check_branch
          %211 = sbr.rel (%p209) target = $region16
        $region15: #{tpu_custom_call.1} parent=11 // pred_region
          %s213 = ssub.s32 32, 32
          %214 = vsyncadd [#allocation6], %s213
          %s216 = sshll.u32 %s0, 4
          %s217 = int_to_ptr.vmem [resolvable:$true] %s216
          %219 = dma.vmem_to_smem %s217, 32, [#allocation3], [#allocation6]
        $region16: #{tpu_custom_call.1} parent=11 // pred_fallthru
          _
        // Predicated region
        $region17: #{tpu_custom_call.1} parent=11 // pred_check
          %p220 = pneg %p112
        $region18: #{tpu_custom_call.1} parent=11 // pred_check_branch
          %222 = sbr.rel (%p220) target = $region20
        $region19: #{tpu_custom_call.1} parent=11 // pred_region
          %s223 = smul.u32 2, %s30
          %p224 = scmp.lt.s32.totalorder %s223, 1
          %s225 = scalar_select %p224, %s223, 1
          %s226 = scalar_lea.vmem %s2, %s225
          %s227 = smul.u32 2, %s30
        $region20: #{tpu_custom_call.1} parent=11 // pred_fallthru
          _
        // Predicated region
        $region21: #{tpu_custom_call.1} parent=11 // pred_check
          %p228 = pneg %p138
        $region22: #{tpu_custom_call.1} parent=11 // pred_check_branch
          %230 = sbr.rel (%p228) target = $region24
        $region23: #{tpu_custom_call.1} parent=11 // pred_region
          %s231 = smul.u32 2, %s30
          %p232 = scmp.lt.s32.totalorder %s231, 1
          %s233 = scalar_select %p232, %s231, 1
          %s234 = scalar_lea.vmem %s3, %s233
          %s235 = smul.u32 2, %s30
        $region24: #{tpu_custom_call.1} parent=11 // pred_fallthru
          _
      $region12: #{tpu_custom_call.1} parent=5 // pred_fallthru
        _
      %p236 = scmp.lt.s32.totalorder %s18, 2
      // Predicated region
      $region25: #{tpu_custom_call.1} parent=5 // pred_check
        %p237 = pneg %p236
      $region26: #{tpu_custom_call.1} parent=5 // pred_check_branch
        %239 = sbr.rel (%p237) target = $region28
      $region27: #{tpu_custom_call.1} parent=5 // pred_region
        // Predicated region
        $region29: #{tpu_custom_call.1} parent=27 // pred_check
          %p240 = pneg %p80
        $region30: #{tpu_custom_call.1} parent=27 // pred_check_branch
          %242 = sbr.rel (%p240) target = $region32
        $region31: #{tpu_custom_call.1} parent=27 // pred_region
          %s243 = smul.u32 8, %s26
          %p244 = scmp.lt.s32.totalorder %s25, 1
          %s245 = scalar_select %p244, %s25, 1
          %p246 = scmp.lt.s32.totalorder %s243, 7
          %s247 = scalar_select %p246, %s243, 7
          %s248 = smul.addr %s245, 8
          %s249 = sadd.s32 %s247, %s248
          %s250 = smul.addr %s249, 8
          %s251 = scalar_lea.vmem %s1, %s250
          %s252 = smul.u32 8, %s26
        $region32: #{tpu_custom_call.1} parent=27 // pred_fallthru
          _
        // Predicated region
        $region33: #{tpu_custom_call.1} parent=27 // pred_check
          %p253 = pneg %p160
        $region34: #{tpu_custom_call.1} parent=27 // pred_check_branch
          %255 = sbr.rel (%p253) target = $region36
        $region35: #{tpu_custom_call.1} parent=27 // pred_region
          %s256 = sand.u32 %s150, 1
          %s257 = scalar_lea.sflag [#allocation4], %s256
          %s258 = sand.u32 %s150, 1
          %s259 = smul.addr %s258, 128
          %s260 = scalar_lea.vmem [#allocation7], %s259
          %s261 = smul.u32 32, %s27
          %s263 = ssub.s32 2048, 2048
          %264 = vsyncadd %s257, %s263
          %s265 = smul.addr %s25, 32
          %s266 = sadd.s32 %s261, %s265
          %s267 = smul.addr %s266, 64
          %s268 = scalar_lea.hbm %s4, %s267
          %s269 = sshll.u32 %s260, 4
          %s270 = int_to_ptr.vmem [resolvable:$true] %s269
          %275 = dma.hbm_to_vmem [thread:$0]  %s268, 2048, %s270, %s257, 64, 64, 4
        $region36: #{tpu_custom_call.1} parent=27 // pred_fallthru
          _
      $region28: #{tpu_custom_call.1} parent=5 // pred_fallthru
        _
      %p276 = scmp.le.s32.totalorder 1, %s18
      %p277 = scmp.lt.s32.totalorder %s18, 3
      %p278 = pnand %p276, %p277
      %p279 = pneg %p278
      // Predicated region
      $region37: #{tpu_custom_call.1} parent=5 // pred_check
        _
      $region38: #{tpu_custom_call.1} parent=5 // pred_check_branch
        %281 = sbr.rel (%p278) target = $region40
      $region39: #{tpu_custom_call.1} parent=5 // pred_region
        %s282 = ssub.s32 %s18, 1
        // Predicated region
        $region41: #{tpu_custom_call.1} parent=39 // pred_check
          %p283 = pneg %p58
        $region42: #{tpu_custom_call.1} parent=39 // pred_check_branch
          %285 = sbr.rel (%p283) target = $region44
        $region43: #{tpu_custom_call.1} parent=39 // pred_region
          %286 = dma.done [#allocation6], 32
        $region44: #{tpu_custom_call.1} parent=39 // pred_fallthru
          _
        %s287 = sand.u32 %s153, 1
        %s288 = scalar_lea.sflag [#allocation4], %s287
        %s289 = sand.u32 %s153, 1
        %s290 = smul.addr %s289, 128
        %s291 = scalar_lea.vmem [#allocation7], %s290
        // Predicated region
        $region45: #{tpu_custom_call.1} parent=39 // pred_check
          %p292 = pneg %p166
        $region46: #{tpu_custom_call.1} parent=39 // pred_check_branch
          %294 = sbr.rel (%p292) target = $region48
        $region47: #{tpu_custom_call.1} parent=39 // pred_region
          %295 = dma.done %s288, 2048
        $region48: #{tpu_custom_call.1} parent=39 // pred_fallthru
          _
        %296 = sfence
        %p297 = pneg %p58
        %p298 = pneg %p55
        %s299 = smul.u32 8, %s29
        %p300 = scmp.lt.s32.totalorder %s28, 1
        %s301 = scalar_select %p300, %s28, 1
        %p302 = scmp.lt.s32.totalorder %s299, 7
        %s303 = scalar_select %p302, %s299, 7
        %s304 = smul.addr %s301, 8
        %s305 = sadd.s32 %s303, %s304
        %s306 = smul.addr %s305, 8
        %s307 = scalar_lea.vmem %s1, %s306
        %p308 = pneg %p86
        %p309 = pneg %p83
        %s310 = smul.u32 2, %s30
        %p311 = scmp.lt.s32.totalorder %s310, 1
        %s312 = scalar_select %p311, %s310, 1
        %s313 = scalar_lea.vmem %s2, %s312
        %p314 = pneg %p112
        %p315 = pneg %p109
        %s316 = smul.u32 2, %s30
        %p317 = scmp.lt.s32.totalorder %s316, 1
        %s318 = scalar_select %p317, %s316, 1
        %s319 = scalar_lea.vmem %s3, %s318
        %p320 = pneg %p138
        %p321 = pneg %p135
        %s322 = sand.u32 %s153, 1
        %s323 = scalar_lea.sflag [#allocation4], %s322
        %s324 = sand.u32 %s153, 1
        %s325 = smul.addr %s324, 128
        %s326 = scalar_lea.vmem [#allocation7], %s325
        %p327 = pneg %p166
        %p328 = pneg %p163
        %p329 = pneg %p194
        %p330 = pneg %p191
        %s331 = sand.u32 %s181, 1
        %s332 = scalar_lea.sflag [#allocation5], %s331
        %s333 = sand.u32 %s181, 1
        %s334 = smul.addr %s333, 64
        %s335 = scalar_lea.vmem [#allocation8], %s334
        %s336 = smul.u32 8, %s29
        %p337 = scmp.lt.s32.totalorder %s28, 1
        %s338 = scalar_select %p337, %s28, 1
        %p339 = scmp.lt.s32.totalorder %s336, 7
        %s340 = scalar_select %p339, %s336, 7
        %s341 = smul.addr %s338, 8
        %s342 = sadd.s32 %s340, %s341
        %s343 = smul.addr %s342, 8
        %s344 = scalar_lea.vmem %s1, %s343
        %s345 = smul.u32 8, %s29
        %s346 = smul.u32 2, %s30
        %p347 = scmp.lt.s32.totalorder %s346, 1
        %s348 = scalar_select %p347, %s346, 1
        %s349 = scalar_lea.vmem %s2, %s348
        %s350 = smul.u32 2, %s30
        %s351 = smul.u32 2, %s30
        %p352 = scmp.lt.s32.totalorder %s351, 1
        %s353 = scalar_select %p352, %s351, 1
        %s354 = scalar_lea.vmem %s3, %s353
        %s355 = smul.u32 2, %s30
        %s356 = smul.u32 32, %s30
        %s357 = smul.u32 8, %s29
        %p359 = scmp.eq.s32.totalorder %s30, 0
        // Predicated region
        $region49: #{tpu_custom_call.1} parent=39 // pred_check
          %p360 = pneg %p359
        $region50: #{tpu_custom_call.1} parent=39 // pred_check_branch
          %362 = sbr.rel (%p360) target = $region52
        $region51: #{tpu_custom_call.1} parent=39 // pred_region
          %363 = vst [vmem:[#allocation2] sm:$0xff] 0.0
          %364 = vst [vmem:[#allocation2 + $0x8] sm:$0xff] 0.0
          %365 = vst [vmem:[#allocation2 + $0x10] sm:$0xff] 0.0
          %366 = vst [vmem:[#allocation2 + $0x18] sm:$0xff] 0.0
          %367 = vst [vmem:[#allocation2 + $0x20] sm:$0xff] 0.0
          %368 = vst [vmem:[#allocation2 + $0x28] sm:$0xff] 0.0
          %369 = vst [vmem:[#allocation2 + $0x30] sm:$0xff] 0.0
          %370 = vst [vmem:[#allocation2 + $0x38] sm:$0xff] 0.0
        $region52: #{tpu_custom_call.1} parent=39 // pred_fallthru
          _
        %v371 = vld [vmem:[%s344] sm:$0xff]
        %v372 = vld [vmem:[%s344 + $0x8] sm:$0xff]
        %v373 = vld [vmem:[%s344 + $0x10] sm:$0xff]
        %v374 = vld [vmem:[%s344 + $0x18] sm:$0xff]
        %v375 = vld [vmem:[%s344 + $0x20] sm:$0xff]
        %v376 = vld [vmem:[%s344 + $0x28] sm:$0xff]
        %v377 = vld [vmem:[%s344 + $0x30] sm:$0xff]
        %v378 = vld [vmem:[%s344 + $0x38] sm:$0xff]
        %s379 = smul.u32 %s28, 128
        %s380 = sld [smem:[#allocation3 + %s379]]
        %s381 = sadd.s32 %s379, 1
        %s382 = sld [smem:[#allocation3 + %s381]]
        %s383 = sadd.s32 %s379, 2
        %s384 = sld [smem:[#allocation3 + %s383]]
        %s385 = sadd.s32 %s379, 3
        %s386 = sld [smem:[#allocation3 + %s385]]
        %s387 = sadd.s32 %s379, 4
        %s388 = sld [smem:[#allocation3 + %s387]]
        %s389 = sadd.s32 %s379, 5
        %s390 = sld [smem:[#allocation3 + %s389]]
        %s391 = sadd.s32 %s379, 6
        %s392 = sld [smem:[#allocation3 + %s391]]
        %s393 = sadd.s32 %s379, 7
        %s394 = sld [smem:[#allocation3 + %s393]]
        %s395 = sadd.s32 %s379, 12
        %s396 = sld [smem:[#allocation3 + %s395]]
        %s397 = sadd.s32 %s379, 13
        %s398 = sld [smem:[#allocation3 + %s397]]
        %s399 = sadd.s32 %s379, 14
        %s400 = sld [smem:[#allocation3 + %s399]]
        %s401 = sadd.s32 %s379, 15
        %s402 = sld [smem:[#allocation3 + %s401]]
        %v403 = vstv %s380
        %v404 = vmul.f32 %v403, %v371
        %v405 = vmul.f32 %v403, %v372
        %v406 = vmul.f32 %v403, %v373
        %v407 = vmul.f32 %v403, %v374
        %v408 = vmul.f32 %v403, %v375
        %v409 = vmul.f32 %v403, %v376
        %v410 = vmul.f32 %v403, %v377
        %v411 = vmul.f32 %v403, %v378
        %v412 = vstv %s382
        %v413 = vmul.f32 %v412, %v371
        %v414 = vmul.f32 %v412, %v372
        %v415 = vmul.f32 %v412, %v373
        %v416 = vmul.f32 %v412, %v374
        %v417 = vmul.f32 %v412, %v375
        %v418 = vmul.f32 %v412, %v376
        %v419 = vmul.f32 %v412, %v377
        %v420 = vmul.f32 %v412, %v378
        %429 = vrot.lane.b32.xlu0 %v413, 127
        %v430 = vpop.permute.xlu0 %429
        %431 = vrot.lane.b32.xlu0 %v414, 127
        %v432 = vpop.permute.xlu0 %431
        %433 = vrot.lane.b32.xlu0 %v415, 127
        %v434 = vpop.permute.xlu0 %433
        %435 = vrot.lane.b32.xlu0 %v416, 127
        %v436 = vpop.permute.xlu0 %435
        %437 = vrot.lane.b32.xlu0 %v417, 127
        %v438 = vpop.permute.xlu0 %437
        %439 = vrot.lane.b32.xlu0 %v418, 127
        %v440 = vpop.permute.xlu0 %439
        %441 = vrot.lane.b32.xlu0 %v419, 127
        %v442 = vpop.permute.xlu0 %441
        %443 = vrot.lane.b32.xlu0 %v420, 127
        %v444 = vpop.permute.xlu0 %443
        %v453 = vadd.f32 %v404, %v430
        %v454 = vadd.f32 %v405, %v432
        %v455 = vadd.f32 %v406, %v434
        %v456 = vadd.f32 %v407, %v436
        %v457 = vadd.f32 %v408, %v438
        %v458 = vadd.f32 %v409, %v440
        %v459 = vadd.f32 %v410, %v442
        %v460 = vadd.f32 %v411, %v444
        %v461 = vstv %s384
        %v462 = vmul.f32 %v461, %v371
        %v463 = vmul.f32 %v461, %v372
        %v464 = vmul.f32 %v461, %v373
        %v465 = vmul.f32 %v461, %v374
        %v466 = vmul.f32 %v461, %v375
        %v467 = vmul.f32 %v461, %v376
        %v468 = vmul.f32 %v461, %v377
        %v469 = vmul.f32 %v461, %v378
        %478 = vrot.lane.b32.xlu0 %v462, 126
        %v479 = vpop.permute.xlu0 %478
        %480 = vrot.lane.b32.xlu0 %v463, 126
        %v481 = vpop.permute.xlu0 %480
        %482 = vrot.lane.b32.xlu0 %v464, 126
        %v483 = vpop.permute.xlu0 %482
        %484 = vrot.lane.b32.xlu0 %v465, 126
        %v485 = vpop.permute.xlu0 %484
        %486 = vrot.lane.b32.xlu0 %v466, 126
        %v487 = vpop.permute.xlu0 %486
        %488 = vrot.lane.b32.xlu0 %v467, 126
        %v489 = vpop.permute.xlu0 %488
        %490 = vrot.lane.b32.xlu0 %v468, 126
        %v491 = vpop.permute.xlu0 %490
        %492 = vrot.lane.b32.xlu0 %v469, 126
        %v493 = vpop.permute.xlu0 %492
        %v502 = vadd.f32 %v453, %v479
        %v503 = vadd.f32 %v454, %v481
        %v504 = vadd.f32 %v455, %v483
        %v505 = vadd.f32 %v456, %v485
        %v506 = vadd.f32 %v457, %v487
        %v507 = vadd.f32 %v458, %v489
        %v508 = vadd.f32 %v459, %v491
        %v509 = vadd.f32 %v460, %v493
        %v510 = vstv %s386
        %v511 = vadd.f32 %v502, %v510
        %v512 = vadd.f32 %v503, %v510
        %v513 = vadd.f32 %v504, %v510
        %v514 = vadd.f32 %v505, %v510
        %v515 = vadd.f32 %v506, %v510
        %v516 = vadd.f32 %v507, %v510
        %v517 = vadd.f32 %v508, %v510
        %v518 = vadd.f32 %v509, %v510
        %v519 = vstv %s388
        %v520 = vmul.f32 %v519, %v371
        %v521 = vmul.f32 %v519, %v372
        %v522 = vmul.f32 %v519, %v373
        %v523 = vmul.f32 %v519, %v374
        %v524 = vmul.f32 %v519, %v375
        %v525 = vmul.f32 %v519, %v376
        %v526 = vmul.f32 %v519, %v377
        %v527 = vmul.f32 %v519, %v378
        %v528 = vstv %s390
        %v529 = vmul.f32 %v528, %v371
        %v530 = vmul.f32 %v528, %v372
        %v531 = vmul.f32 %v528, %v373
        %v532 = vmul.f32 %v528, %v374
        %v533 = vmul.f32 %v528, %v375
        %v534 = vmul.f32 %v528, %v376
        %v535 = vmul.f32 %v528, %v377
        %v536 = vmul.f32 %v528, %v378
        %545 = vrot.lane.b32.xlu0 %v529, 127
        %v546 = vpop.permute.xlu0 %545
        %547 = vrot.lane.b32.xlu0 %v530, 127
        %v548 = vpop.permute.xlu0 %547
        %549 = vrot.lane.b32.xlu0 %v531, 127
        %v550 = vpop.permute.xlu0 %549
        %551 = vrot.lane.b32.xlu0 %v532, 127
        %v552 = vpop.permute.xlu0 %551
        %553 = vrot.lane.b32.xlu0 %v533, 127
        %v554 = vpop.permute.xlu0 %553
        %555 = vrot.lane.b32.xlu0 %v534, 127
        %v556 = vpop.permute.xlu0 %555
        %557 = vrot.lane.b32.xlu0 %v535, 127
        %v558 = vpop.permute.xlu0 %557
        %559 = vrot.lane.b32.xlu0 %v536, 127
        %v560 = vpop.permute.xlu0 %559
        %v569 = vadd.f32 %v520, %v546
        %v570 = vadd.f32 %v521, %v548
        %v571 = vadd.f32 %v522, %v550
        %v572 = vadd.f32 %v523, %v552
        %v573 = vadd.f32 %v524, %v554
        %v574 = vadd.f32 %v525, %v556
        %v575 = vadd.f32 %v526, %v558
        %v576 = vadd.f32 %v527, %v560
        %v577 = vstv %s392
        %v578 = vmul.f32 %v577, %v371
        %v579 = vmul.f32 %v577, %v372
        %v580 = vmul.f32 %v577, %v373
        %v581 = vmul.f32 %v577, %v374
        %v582 = vmul.f32 %v577, %v375
        %v583 = vmul.f32 %v577, %v376
        %v584 = vmul.f32 %v577, %v377
        %v585 = vmul.f32 %v577, %v378
        %594 = vrot.lane.b32.xlu0 %v578, 126
        %v595 = vpop.permute.xlu0 %594
        %596 = vrot.lane.b32.xlu0 %v579, 126
        %v597 = vpop.permute.xlu0 %596
        %598 = vrot.lane.b32.xlu0 %v580, 126
        %v599 = vpop.permute.xlu0 %598
        %600 = vrot.lane.b32.xlu0 %v581, 126
        %v601 = vpop.permute.xlu0 %600
        %602 = vrot.lane.b32.xlu0 %v582, 126
        %v603 = vpop.permute.xlu0 %602
        %604 = vrot.lane.b32.xlu0 %v583, 126
        %v605 = vpop.permute.xlu0 %604
        %606 = vrot.lane.b32.xlu0 %v584, 126
        %v607 = vpop.permute.xlu0 %606
        %608 = vrot.lane.b32.xlu0 %v585, 126
        %v609 = vpop.permute.xlu0 %608
        %v618 = vadd.f32 %v569, %v595
        %v619 = vadd.f32 %v570, %v597
        %v620 = vadd.f32 %v571, %v599
        %v621 = vadd.f32 %v572, %v601
        %v622 = vadd.f32 %v573, %v603
        %v623 = vadd.f32 %v574, %v605
        %v624 = vadd.f32 %v575, %v607
        %v625 = vadd.f32 %v576, %v609
        %v626 = vstv %s394
        %v627 = vadd.f32 %v618, %v626
        %v628 = vadd.f32 %v619, %v626
        %v629 = vadd.f32 %v620, %v626
        %v630 = vadd.f32 %v621, %v626
        %v631 = vadd.f32 %v622, %v626
        %v632 = vadd.f32 %v623, %v626
        %v633 = vadd.f32 %v624, %v626
        %v634 = vadd.f32 %v625, %v626
        %v635 = vstv %s396
        %v636 = vmul.f32 %v635, %v371
        %v637 = vmul.f32 %v635, %v372
        %v638 = vmul.f32 %v635, %v373
        %v639 = vmul.f32 %v635, %v374
        %v640 = vmul.f32 %v635, %v375
        %v641 = vmul.f32 %v635, %v376
        %v642 = vmul.f32 %v635, %v377
        %v643 = vmul.f32 %v635, %v378
        %v644 = vstv %s398
        %v645 = vmul.f32 %v644, %v371
        %v646 = vmul.f32 %v644, %v372
        %v647 = vmul.f32 %v644, %v373
        %v648 = vmul.f32 %v644, %v374
        %v649 = vmul.f32 %v644, %v375
        %v650 = vmul.f32 %v644, %v376
        %v651 = vmul.f32 %v644, %v377
        %v652 = vmul.f32 %v644, %v378
        %661 = vrot.lane.b32.xlu0 %v645, 127
        %v662 = vpop.permute.xlu0 %661
        %663 = vrot.lane.b32.xlu0 %v646, 127
        %v664 = vpop.permute.xlu0 %663
        %665 = vrot.lane.b32.xlu0 %v647, 127
        %v666 = vpop.permute.xlu0 %665
        %667 = vrot.lane.b32.xlu0 %v648, 127
        %v668 = vpop.permute.xlu0 %667
        %669 = vrot.lane.b32.xlu0 %v649, 127
        %v670 = vpop.permute.xlu0 %669
        %671 = vrot.lane.b32.xlu0 %v650, 127
        %v672 = vpop.permute.xlu0 %671
        %673 = vrot.lane.b32.xlu0 %v651, 127
        %v674 = vpop.permute.xlu0 %673
        %675 = vrot.lane.b32.xlu0 %v652, 127
        %v676 = vpop.permute.xlu0 %675
        %v685 = vadd.f32 %v636, %v662
        %v686 = vadd.f32 %v637, %v664
        %v687 = vadd.f32 %v638, %v666
        %v688 = vadd.f32 %v639, %v668
        %v689 = vadd.f32 %v640, %v670
        %v690 = vadd.f32 %v641, %v672
        %v691 = vadd.f32 %v642, %v674
        %v692 = vadd.f32 %v643, %v676
        %v693 = vstv %s400
        %v694 = vmul.f32 %v693, %v371
        %v695 = vmul.f32 %v693, %v372
        %v696 = vmul.f32 %v693, %v373
        %v697 = vmul.f32 %v693, %v374
        %v698 = vmul.f32 %v693, %v375
        %v699 = vmul.f32 %v693, %v376
        %v700 = vmul.f32 %v693, %v377
        %v701 = vmul.f32 %v693, %v378
        %710 = vrot.lane.b32.xlu0 %v694, 126
        %v711 = vpop.permute.xlu0 %710
        %712 = vrot.lane.b32.xlu0 %v695, 126
        %v713 = vpop.permute.xlu0 %712
        %714 = vrot.lane.b32.xlu0 %v696, 126
        %v715 = vpop.permute.xlu0 %714
        %716 = vrot.lane.b32.xlu0 %v697, 126
        %v717 = vpop.permute.xlu0 %716
        %718 = vrot.lane.b32.xlu0 %v698, 126
        %v719 = vpop.permute.xlu0 %718
        %720 = vrot.lane.b32.xlu0 %v699, 126
        %v721 = vpop.permute.xlu0 %720
        %722 = vrot.lane.b32.xlu0 %v700, 126
        %v723 = vpop.permute.xlu0 %722
        %724 = vrot.lane.b32.xlu0 %v701, 126
        %v725 = vpop.permute.xlu0 %724
        %v734 = vadd.f32 %v685, %v711
        %v735 = vadd.f32 %v686, %v713
        %v736 = vadd.f32 %v687, %v715
        %v737 = vadd.f32 %v688, %v717
        %v738 = vadd.f32 %v689, %v719
        %v739 = vadd.f32 %v690, %v721
        %v740 = vadd.f32 %v691, %v723
        %v741 = vadd.f32 %v692, %v725
        %v742 = vstv %s402
        %v743 = vadd.f32 %v734, %v742
        %v744 = vadd.f32 %v735, %v742
        %v745 = vadd.f32 %v736, %v742
        %v746 = vadd.f32 %v737, %v742
        %v747 = vadd.f32 %v738, %v742
        %v748 = vadd.f32 %v739, %v742
        %v749 = vadd.f32 %v740, %v742
        %v750 = vadd.f32 %v741, %v742
        %v751 = vand.u32 2147483647, %v743
        %v752 = vand.u32 2147483647, %v744
        %v753 = vand.u32 2147483647, %v745
        %v754 = vand.u32 2147483647, %v746
        %v755 = vand.u32 2147483647, %v747
        %v756 = vand.u32 2147483647, %v748
        %v757 = vand.u32 2147483647, %v749
        %v758 = vand.u32 2147483647, %v750
        %vm759 = vcmp.lt.f32.partialorder %v751, 1e-06
        %vm760 = vcmp.lt.f32.partialorder %v752, 1e-06
        %vm761 = vcmp.lt.f32.partialorder %v753, 1e-06
        %vm762 = vcmp.lt.f32.partialorder %v754, 1e-06
        %vm763 = vcmp.lt.f32.partialorder %v755, 1e-06
        %vm764 = vcmp.lt.f32.partialorder %v756, 1e-06
        %vm765 = vcmp.lt.f32.partialorder %v757, 1e-06
        %vm766 = vcmp.lt.f32.partialorder %v758, 1e-06
        %v767 = vsel %vm759, 1e-06, %v743
        %v768 = vsel %vm760, 1e-06, %v744
        %v769 = vsel %vm761, 1e-06, %v745
        %v770 = vsel %vm762, 1e-06, %v746
        %v771 = vsel %vm763, 1e-06, %v747
        %v772 = vsel %vm764, 1e-06, %v748
        %v773 = vsel %vm765, 1e-06, %v749
        %v774 = vsel %vm766, 1e-06, %v750
        %v775 = vrcp.pop %v767
        %v776 = vrcp.pop %v768
        %v777 = vrcp.pop %v769
        %v778 = vrcp.pop %v770
        %v779 = vrcp.pop %v771
        %v780 = vrcp.pop %v772
        %v781 = vrcp.pop %v773
        %v782 = vrcp.pop %v774
        %v783 = vmul.f32 %v511, %v775
        %v784 = vmul.f32 %v512, %v776
        %v785 = vmul.f32 %v513, %v777
        %v786 = vmul.f32 %v514, %v778
        %v787 = vmul.f32 %v515, %v779
        %v788 = vmul.f32 %v516, %v780
        %v789 = vmul.f32 %v517, %v781
        %v790 = vmul.f32 %v518, %v782
        %v791 = vmul.f32 %v627, %v775
        %v792 = vmul.f32 %v628, %v776
        %v793 = vmul.f32 %v629, %v777
        %v794 = vmul.f32 %v630, %v778
        %v795 = vmul.f32 %v631, %v779
        %v796 = vmul.f32 %v632, %v780
        %v797 = vmul.f32 %v633, %v781
        %v798 = vmul.f32 %v634, %v782
        %v799 = vadd.f32 %v783, 1.0
        %v800 = vadd.f32 %v784, 1.0
        %v801 = vadd.f32 %v785, 1.0
        %v802 = vadd.f32 %v786, 1.0
        %v803 = vadd.f32 %v787, 1.0
        %v804 = vadd.f32 %v788, 1.0
        %v805 = vadd.f32 %v789, 1.0
        %v806 = vadd.f32 %v790, 1.0
        %v807 = vmul.f32 %v799, 8.0
        %v808 = vmul.f32 %v800, 8.0
        %v809 = vmul.f32 %v801, 8.0
        %v810 = vmul.f32 %v802, 8.0
        %v811 = vmul.f32 %v803, 8.0
        %v812 = vmul.f32 %v804, 8.0
        %v813 = vmul.f32 %v805, 8.0
        %v814 = vmul.f32 %v806, 8.0
        %v815 = vsub.f32 %v807, 0.5
        %v816 = vsub.f32 %v808, 0.5
        %v817 = vsub.f32 %v809, 0.5
        %v818 = vsub.f32 %v810, 0.5
        %v819 = vsub.f32 %v811, 0.5
        %v820 = vsub.f32 %v812, 0.5
        %v821 = vsub.f32 %v813, 0.5
        %v822 = vsub.f32 %v814, 0.5
        %v823 = vadd.f32 %v791, 1.0
        %v824 = vadd.f32 %v792, 1.0
        %v825 = vadd.f32 %v793, 1.0
        %v826 = vadd.f32 %v794, 1.0
        %v827 = vadd.f32 %v795, 1.0
        %v828 = vadd.f32 %v796, 1.0
        %v829 = vadd.f32 %v797, 1.0
        %v830 = vadd.f32 %v798, 1.0
        %v831 = vmul.f32 %v823, 8.0
        %v832 = vmul.f32 %v824, 8.0
        %v833 = vmul.f32 %v825, 8.0
        %v834 = vmul.f32 %v826, 8.0
        %v835 = vmul.f32 %v827, 8.0
        %v836 = vmul.f32 %v828, 8.0
        %v837 = vmul.f32 %v829, 8.0
        %v838 = vmul.f32 %v830, 8.0
        %v839 = vsub.f32 %v831, 0.5
        %v840 = vsub.f32 %v832, 0.5
        %v841 = vsub.f32 %v833, 0.5
        %v842 = vsub.f32 %v834, 0.5
        %v843 = vsub.f32 %v835, 0.5
        %v844 = vsub.f32 %v836, 0.5
        %v845 = vsub.f32 %v837, 0.5
        %v846 = vsub.f32 %v838, 0.5
        %v847 = vld [vmem:[%s349] sm:$0x3]
        %v848 = vld [vmem:[%s354] sm:$0x3]
        %v850 = vlaneseq
        %v851 = vshrl.u32 %v850, 7
        %v852 = vsub.s32 0, %v851
        %v853 = vrot.slane %v848, %v852
        %v854 = vlaneseq
        %v855 = vshrl.u32 %v854, 7
        %v856 = vsub.s32 1, %v855
        %v857 = vrot.slane %v848, %v856
        %861 = vset.pattern.permute.xlu0 0
        %862 = vperm.xlu0 %861, %v839
        %v863 = vpop.permute.xlu0 %862
        %866 = vset.pattern.permute.xlu0 0
        %867 = vperm.xlu0 %866, %v840
        %v868 = vpop.permute.xlu0 %867
        %871 = vset.pattern.permute.xlu0 0
        %872 = vperm.xlu0 %871, %v841
        %v873 = vpop.permute.xlu0 %872
        %876 = vset.pattern.permute.xlu0 0
        %877 = vperm.xlu0 %876, %v842
        %v878 = vpop.permute.xlu0 %877
        %881 = vset.pattern.permute.xlu0 0
        %882 = vperm.xlu0 %881, %v843
        %v883 = vpop.permute.xlu0 %882
        %886 = vset.pattern.permute.xlu0 0
        %887 = vperm.xlu0 %886, %v844
        %v888 = vpop.permute.xlu0 %887
        %891 = vset.pattern.permute.xlu0 0
        %892 = vperm.xlu0 %891, %v845
        %v893 = vpop.permute.xlu0 %892
        %896 = vset.pattern.permute.xlu0 0
        %897 = vperm.xlu0 %896, %v846
        %v898 = vpop.permute.xlu0 %897
        %v900 = vsub.f32 %v853, %v863
        %v901 = vsub.f32 %v857, %v863
        %v902 = vsub.f32 %v853, %v868
        %v903 = vsub.f32 %v857, %v868
        %v904 = vsub.f32 %v853, %v873
        %v905 = vsub.f32 %v857, %v873
        %v906 = vsub.f32 %v853, %v878
        %v907 = vsub.f32 %v857, %v878
        %v908 = vsub.f32 %v853, %v883
        %v909 = vsub.f32 %v857, %v883
        %v910 = vsub.f32 %v853, %v888
        %v911 = vsub.f32 %v857, %v888
        %v912 = vsub.f32 %v853, %v893
        %v913 = vsub.f32 %v857, %v893
        %v914 = vsub.f32 %v853, %v898
        %v915 = vsub.f32 %v857, %v898
        %v916 = vand.u32 2147483647, %v900
        %v917 = vand.u32 2147483647, %v901
        %v918 = vand.u32 2147483647, %v902
        %v919 = vand.u32 2147483647, %v903
        %v920 = vand.u32 2147483647, %v904
        %v921 = vand.u32 2147483647, %v905
        %v922 = vand.u32 2147483647, %v906
        %v923 = vand.u32 2147483647, %v907
        %v924 = vand.u32 2147483647, %v908
        %v925 = vand.u32 2147483647, %v909
        %v926 = vand.u32 2147483647, %v910
        %v927 = vand.u32 2147483647, %v911
        %v928 = vand.u32 2147483647, %v912
        %v929 = vand.u32 2147483647, %v913
        %v930 = vand.u32 2147483647, %v914
        %v931 = vand.u32 2147483647, %v915
        %v932 = vsub.f32 1.0, %v916
        %v933 = vsub.f32 1.0, %v917
        %v934 = vsub.f32 1.0, %v918
        %v935 = vsub.f32 1.0, %v919
        %v936 = vsub.f32 1.0, %v920
        %v937 = vsub.f32 1.0, %v921
        %v938 = vsub.f32 1.0, %v922
        %v939 = vsub.f32 1.0, %v923
        %v940 = vsub.f32 1.0, %v924
        %v941 = vsub.f32 1.0, %v925
        %v942 = vsub.f32 1.0, %v926
        %v943 = vsub.f32 1.0, %v927
        %v944 = vsub.f32 1.0, %v928
        %v945 = vsub.f32 1.0, %v929
        %v946 = vsub.f32 1.0, %v930
        %v947 = vsub.f32 1.0, %v931
        %v948 = vmax.f32 %v932, 0.0
        %v949 = vmax.f32 %v933, 0.0
        %v950 = vmax.f32 %v934, 0.0
        %v951 = vmax.f32 %v935, 0.0
        %v952 = vmax.f32 %v936, 0.0
        %v953 = vmax.f32 %v937, 0.0
        %v954 = vmax.f32 %v938, 0.0
        %v955 = vmax.f32 %v939, 0.0
        %v956 = vmax.f32 %v940, 0.0
        %v957 = vmax.f32 %v941, 0.0
        %v958 = vmax.f32 %v942, 0.0
        %v959 = vmax.f32 %v943, 0.0
        %v960 = vmax.f32 %v944, 0.0
        %v961 = vmax.f32 %v945, 0.0
        %v962 = vmax.f32 %v946, 0.0
        %v963 = vmax.f32 %v947, 0.0
        %v965 = vlaneseq
        %v966 = vshrl.u32 %v965, 7
        %v967 = vsub.s32 0, %v966
        %v968 = vrot.slane %v847, %v967
        %v969 = vlaneseq
        %v970 = vshrl.u32 %v969, 7
        %v971 = vsub.s32 1, %v970
        %v972 = vrot.slane %v847, %v971
        %976 = vset.pattern.permute.xlu0 0
        %977 = vperm.xlu0 %976, %v815
        %v978 = vpop.permute.xlu0 %977
        %981 = vset.pattern.permute.xlu0 0
        %982 = vperm.xlu0 %981, %v816
        %v983 = vpop.permute.xlu0 %982
        %986 = vset.pattern.permute.xlu0 0
        %987 = vperm.xlu0 %986, %v817
        %v988 = vpop.permute.xlu0 %987
        %991 = vset.pattern.permute.xlu0 0
        %992 = vperm.xlu0 %991, %v818
        %v993 = vpop.permute.xlu0 %992
        %996 = vset.pattern.permute.xlu0 0
        %997 = vperm.xlu0 %996, %v819
        %v998 = vpop.permute.xlu0 %997
        %1001 = vset.pattern.permute.xlu0 0
        %1002 = vperm.xlu0 %1001, %v820
        %v1003 = vpop.permute.xlu0 %1002
        %1006 = vset.pattern.permute.xlu0 0
        %1007 = vperm.xlu0 %1006, %v821
        %v1008 = vpop.permute.xlu0 %1007
        %1011 = vset.pattern.permute.xlu0 0
        %1012 = vperm.xlu0 %1011, %v822
        %v1013 = vpop.permute.xlu0 %1012
        %v1015 = vsub.f32 %v968, %v978
        %v1016 = vsub.f32 %v972, %v978
        %v1017 = vsub.f32 %v968, %v983
        %v1018 = vsub.f32 %v972, %v983
        %v1019 = vsub.f32 %v968, %v988
        %v1020 = vsub.f32 %v972, %v988
        %v1021 = vsub.f32 %v968, %v993
        %v1022 = vsub.f32 %v972, %v993
        %v1023 = vsub.f32 %v968, %v998
        %v1024 = vsub.f32 %v972, %v998
        %v1025 = vsub.f32 %v968, %v1003
        %v1026 = vsub.f32 %v972, %v1003
        %v1027 = vsub.f32 %v968, %v1008
        %v1028 = vsub.f32 %v972, %v1008
        %v1029 = vsub.f32 %v968, %v1013
        %v1030 = vsub.f32 %v972, %v1013
        %v1031 = vand.u32 2147483647, %v1015
        %v1032 = vand.u32 2147483647, %v1016
        %v1033 = vand.u32 2147483647, %v1017
        %v1034 = vand.u32 2147483647, %v1018
        %v1035 = vand.u32 2147483647, %v1019
        %v1036 = vand.u32 2147483647, %v1020
        %v1037 = vand.u32 2147483647, %v1021
        %v1038 = vand.u32 2147483647, %v1022
        %v1039 = vand.u32 2147483647, %v1023
        %v1040 = vand.u32 2147483647, %v1024
        %v1041 = vand.u32 2147483647, %v1025
        %v1042 = vand.u32 2147483647, %v1026
        %v1043 = vand.u32 2147483647, %v1027
        %v1044 = vand.u32 2147483647, %v1028
        %v1045 = vand.u32 2147483647, %v1029
        %v1046 = vand.u32 2147483647, %v1030
        %v1047 = vsub.f32 1.0, %v1031
        %v1048 = vsub.f32 1.0, %v1032
        %v1049 = vsub.f32 1.0, %v1033
        %v1050 = vsub.f32 1.0, %v1034
        %v1051 = vsub.f32 1.0, %v1035
        %v1052 = vsub.f32 1.0, %v1036
        %v1053 = vsub.f32 1.0, %v1037
        %v1054 = vsub.f32 1.0, %v1038
        %v1055 = vsub.f32 1.0, %v1039
        %v1056 = vsub.f32 1.0, %v1040
        %v1057 = vsub.f32 1.0, %v1041
        %v1058 = vsub.f32 1.0, %v1042
        %v1059 = vsub.f32 1.0, %v1043
        %v1060 = vsub.f32 1.0, %v1044
        %v1061 = vsub.f32 1.0, %v1045
        %v1062 = vsub.f32 1.0, %v1046
        %v1063 = vmax.f32 %v1047, 0.0
        %v1064 = vmax.f32 %v1048, 0.0
        %v1065 = vmax.f32 %v1049, 0.0
        %v1066 = vmax.f32 %v1050, 0.0
        %v1067 = vmax.f32 %v1051, 0.0
        %v1068 = vmax.f32 %v1052, 0.0
        %v1069 = vmax.f32 %v1053, 0.0
        %v1070 = vmax.f32 %v1054, 0.0
        %v1071 = vmax.f32 %v1055, 0.0
        %v1072 = vmax.f32 %v1056, 0.0
        %v1073 = vmax.f32 %v1057, 0.0
        %v1074 = vmax.f32 %v1058, 0.0
        %v1075 = vmax.f32 %v1059, 0.0
        %v1076 = vmax.f32 %v1060, 0.0
        %v1077 = vmax.f32 %v1061, 0.0
        %v1078 = vmax.f32 %v1062, 0.0
        %v1079 = vmul.f32 %v1063, %v948
        %v1080 = vmul.f32 %v1064, %v949
        %v1081 = vmul.f32 %v1065, %v950
        %v1082 = vmul.f32 %v1066, %v951
        %v1083 = vmul.f32 %v1067, %v952
        %v1084 = vmul.f32 %v1068, %v953
        %v1085 = vmul.f32 %v1069, %v954
        %v1086 = vmul.f32 %v1070, %v955
        %v1087 = vmul.f32 %v1071, %v956
        %v1088 = vmul.f32 %v1072, %v957
        %v1089 = vmul.f32 %v1073, %v958
        %v1090 = vmul.f32 %v1074, %v959
        %v1091 = vmul.f32 %v1075, %v960
        %v1092 = vmul.f32 %v1076, %v961
        %v1093 = vmul.f32 %v1077, %v962
        %v1094 = vmul.f32 %v1078, %v963
        %v1095 = vld [vmem:[#allocation2] sm:$0xff]
        %v1096 = vld [vmem:[#allocation2 + $0x8] sm:$0xff]
        %v1097 = vld [vmem:[#allocation2 + $0x10] sm:$0xff]
        %v1098 = vld [vmem:[#allocation2 + $0x18] sm:$0xff]
        %v1099 = vld [vmem:[#allocation2 + $0x20] sm:$0xff]
        %v1100 = vld [vmem:[#allocation2 + $0x28] sm:$0xff]
        %v1101 = vld [vmem:[#allocation2 + $0x30] sm:$0xff]
        %v1102 = vld [vmem:[#allocation2 + $0x38] sm:$0xff]
        %v1103 = vpack.c.bf16 %v1081, %v1079
        %v1104 = vpack.c.bf16 %v1082, %v1080
        %v1105 = vpack.c.bf16 %v1085, %v1083
        %v1106 = vpack.c.bf16 %v1086, %v1084
        %v1107 = vpack.c.bf16 %v1089, %v1087
        %v1108 = vpack.c.bf16 %v1090, %v1088
        %v1109 = vpack.c.bf16 %v1093, %v1091
        %v1110 = vpack.c.bf16 %v1094, %v1092
        %v1111 = vld [vmem:[%s291] sm:$0xf]
        %v1112 = vld [vmem:[%s291 + $0x4] sm:$0xf]
        %v1113 = vld [vmem:[%s291 + $0x8] sm:$0xf]
        %v1114 = vld [vmem:[%s291 + $0xc] sm:$0xf]
        %v1115 = vld [vmem:[%s291 + $0x10] sm:$0xf]
        %v1116 = vld [vmem:[%s291 + $0x14] sm:$0xf]
        %v1117 = vld [vmem:[%s291 + $0x18] sm:$0xf]
        %v1118 = vld [vmem:[%s291 + $0x1c] sm:$0xf]
        %v1119 = vld [vmem:[%s291 + $0x20] sm:$0xf]
        %v1120 = vld [vmem:[%s291 + $0x24] sm:$0xf]
        %v1121 = vld [vmem:[%s291 + $0x28] sm:$0xf]
        %v1122 = vld [vmem:[%s291 + $0x2c] sm:$0xf]
        %v1123 = vld [vmem:[%s291 + $0x30] sm:$0xf]
        %v1124 = vld [vmem:[%s291 + $0x34] sm:$0xf]
        %v1125 = vld [vmem:[%s291 + $0x38] sm:$0xf]
        %v1126 = vld [vmem:[%s291 + $0x3c] sm:$0xf]
        %v1127 = vld [vmem:[%s291 + $0x40] sm:$0xf]
        %v1128 = vld [vmem:[%s291 + $0x44] sm:$0xf]
        %v1129 = vld [vmem:[%s291 + $0x48] sm:$0xf]
        %v1130 = vld [vmem:[%s291 + $0x4c] sm:$0xf]
        %v1131 = vld [vmem:[%s291 + $0x50] sm:$0xf]
        %v1132 = vld [vmem:[%s291 + $0x54] sm:$0xf]
        %v1133 = vld [vmem:[%s291 + $0x58] sm:$0xf]
        %v1134 = vld [vmem:[%s291 + $0x5c] sm:$0xf]
        %v1135 = vld [vmem:[%s291 + $0x60] sm:$0xf]
        %v1136 = vld [vmem:[%s291 + $0x64] sm:$0xf]
        %v1137 = vld [vmem:[%s291 + $0x68] sm:$0xf]
        %v1138 = vld [vmem:[%s291 + $0x6c] sm:$0xf]
        %v1139 = vld [vmem:[%s291 + $0x70] sm:$0xf]
        %v1140 = vld [vmem:[%s291 + $0x74] sm:$0xf]
        %v1141 = vld [vmem:[%s291 + $0x78] sm:$0xf]
        %v1142 = vld [vmem:[%s291 + $0x7c] sm:$0xf]
        %v1175 = vunpack.c.l.b16 %v1111
        %v1176 = vunpack.c.l.b16 %v1112
        %v1177 = vunpack.c.l.b16 %v1113
        %v1178 = vunpack.c.l.b16 %v1114
        %v1179 = vunpack.c.l.b16 %v1115
        %v1180 = vunpack.c.l.b16 %v1116
        %v1181 = vunpack.c.l.b16 %v1117
        %v1182 = vunpack.c.l.b16 %v1118
        %v1183 = vunpack.c.l.b16 %v1119
        %v1184 = vunpack.c.l.b16 %v1120
        %v1185 = vunpack.c.l.b16 %v1121
        %v1186 = vunpack.c.l.b16 %v1122
        %v1187 = vunpack.c.l.b16 %v1123
        %v1188 = vunpack.c.l.b16 %v1124
        %v1189 = vunpack.c.l.b16 %v1125
        %v1190 = vunpack.c.l.b16 %v1126
        %v1191 = vunpack.c.l.b16 %v1127
        %v1192 = vunpack.c.l.b16 %v1128
        %v1193 = vunpack.c.l.b16 %v1129
        %v1194 = vunpack.c.l.b16 %v1130
        %v1195 = vunpack.c.l.b16 %v1131
        %v1196 = vunpack.c.l.b16 %v1132
        %v1197 = vunpack.c.l.b16 %v1133
        %v1198 = vunpack.c.l.b16 %v1134
        %v1199 = vunpack.c.l.b16 %v1135
        %v1200 = vunpack.c.l.b16 %v1136
        %v1201 = vunpack.c.l.b16 %v1137
        %v1202 = vunpack.c.l.b16 %v1138
        %v1203 = vunpack.c.l.b16 %v1139
        %v1204 = vunpack.c.l.b16 %v1140
        %v1205 = vunpack.c.l.b16 %v1141
        %v1206 = vunpack.c.l.b16 %v1142
        %v1207 = vpack.c.b16 %v1176, %v1175
        %v1208 = vpack.c.b16 %v1178, %v1177
        %v1209 = vpack.c.b16 %v1180, %v1179
        %v1210 = vpack.c.b16 %v1182, %v1181
        %v1211 = vpack.c.b16 %v1184, %v1183
        %v1212 = vpack.c.b16 %v1186, %v1185
        %v1213 = vpack.c.b16 %v1188, %v1187
        %v1214 = vpack.c.b16 %v1190, %v1189
        %v1215 = vpack.c.b16 %v1192, %v1191
        %v1216 = vpack.c.b16 %v1194, %v1193
        %v1217 = vpack.c.b16 %v1196, %v1195
        %v1218 = vpack.c.b16 %v1198, %v1197
        %v1219 = vpack.c.b16 %v1200, %v1199
        %v1220 = vpack.c.b16 %v1202, %v1201
        %v1221 = vpack.c.b16 %v1204, %v1203
        %v1222 = vpack.c.b16 %v1206, %v1205
        %1239 = vmatprep.subr.bf16.mxu0 0
        %1240 = vmatpush1.bf16.msra.mxu0 %v1207
        %1241 = vmatprep.subr.bf16.mxu0 0
        %1242 = vmatpush1.bf16.msra.mxu0 %v1208
        %1243 = vmatprep.subr.bf16.mxu0 0
        %1244 = vmatpush1.bf16.msra.mxu0 %v1209
        %1245 = vmatprep.subr.bf16.mxu0 0
        %1246 = vmatpush1.bf16.msra.mxu0 %v1210
        %1247 = vmatprep.subr.bf16.mxu0 0
        %1248 = vmatpush1.bf16.msra.mxu0 %v1211
        %1249 = vmatprep.subr.bf16.mxu0 0
        %1250 = vmatpush1.bf16.msra.mxu0 %v1212
        %1251 = vmatprep.subr.bf16.mxu0 0
        %1252 = vmatpush1.bf16.msra.mxu0 %v1213
        %1253 = vmatprep.subr.bf16.mxu0 0
        %1254 = vmatpush1.bf16.msra.mxu0 %v1214
        %1255 = vmatprep.subr.bf16.mxu0 0
        %1256 = vmatpush1.bf16.msra.mxu0 %v1215
        %1257 = vmatprep.subr.bf16.mxu0 0
        %1258 = vmatpush1.bf16.msra.mxu0 %v1216
        %1259 = vmatprep.subr.bf16.mxu0 0
        %1260 = vmatpush1.bf16.msra.mxu0 %v1217
        %1261 = vmatprep.subr.bf16.mxu0 0
        %1262 = vmatpush1.bf16.msra.mxu0 %v1218
        %1263 = vmatprep.subr.bf16.mxu0 0
        %1264 = vmatpush1.bf16.msra.mxu0 %v1219
        %1265 = vmatprep.subr.bf16.mxu0 0
        %1266 = vmatpush1.bf16.msra.mxu0 %v1220
        %1267 = vmatprep.subr.bf16.mxu0 0
        %1268 = vmatpush1.bf16.msra.mxu0 %v1221
        %1269 = vmatprep.subr.bf16.mxu0 0
        %1270 = vmatpush1.bf16.msra.mxu0 %v1222
        %1271 = vmatprep.mubr.bf16.mxu0 %v1104
        %1272 = vmatmul.mubr.bf16.gmra.mrb[0].mxu0 %v1103
        %v1273 = vpop.f32.mrb[0].mxu0
        %v1274 = vadd.f32 0.0, %v1273
        %v1275 = vpop.f32.mrb[0].mxu0
        %v1276 = vpop.f32.mrb[0].mxu0
        %v1277 = vadd.f32 0.0, %v1276
        %v1278 = vpop.f32.mrb[0].mxu0
        %1279 = vmatprep.mubr.bf16.mxu0 %v1106
        %1280 = vmatmul.mubr.bf16.gmra.mrb[0].mxu0 %v1105
        %v1281 = vpop.f32.mrb[0].mxu0
        %v1282 = vadd.f32 0.0, %v1281
        %v1283 = vpop.f32.mrb[0].mxu0
        %v1284 = vpop.f32.mrb[0].mxu0
        %v1285 = vadd.f32 0.0, %v1284
        %v1286 = vpop.f32.mrb[0].mxu0
        %1287 = vmatprep.mubr.bf16.mxu0 %v1108
        %1288 = vmatmul.mubr.bf16.gmra.mrb[0].mxu0 %v1107
        %v1289 = vpop.f32.mrb[0].mxu0
        %v1290 = vadd.f32 0.0, %v1289
        %v1291 = vpop.f32.mrb[0].mxu0
        %v1292 = vpop.f32.mrb[0].mxu0
        %v1293 = vadd.f32 0.0, %v1292
        %v1294 = vpop.f32.mrb[0].mxu0
        %1295 = vmatprep.mubr.bf16.mxu0 %v1110
        %1296 = vmatmul.mubr.bf16.gmra.mrb[0].mxu0 %v1109
        %v1297 = vpop.f32.mrb[0].mxu0
        %v1298 = vadd.f32 0.0, %v1297
        %v1299 = vpop.f32.mrb[0].mxu0
        %v1300 = vpop.f32.mrb[0].mxu0
        %v1301 = vadd.f32 0.0, %v1300
        %v1302 = vpop.f32.mrb[0].mxu0
        %1303 = vdwg.mxu0
        %v1304 = vadd.f32 %v1095, %v1274
        %v1305 = vadd.f32 %v1096, %v1277
        %v1306 = vadd.f32 %v1097, %v1282
        %v1307 = vadd.f32 %v1098, %v1285
        %v1308 = vadd.f32 %v1099, %v1290
        %v1309 = vadd.f32 %v1100, %v1293
        %v1310 = vadd.f32 %v1101, %v1298
        %v1311 = vadd.f32 %v1102, %v1301
        %1312 = vst [vmem:[#allocation2] sm:$0xff] %v1304
        %1313 = vst [vmem:[#allocation2 + $0x8] sm:$0xff] %v1305
        %1314 = vst [vmem:[#allocation2 + $0x10] sm:$0xff] %v1306
        %1315 = vst [vmem:[#allocation2 + $0x18] sm:$0xff] %v1307
        %1316 = vst [vmem:[#allocation2 + $0x20] sm:$0xff] %v1308
        %1317 = vst [vmem:[#allocation2 + $0x28] sm:$0xff] %v1309
        %1318 = vst [vmem:[#allocation2 + $0x30] sm:$0xff] %v1310
        %1319 = vst [vmem:[#allocation2 + $0x38] sm:$0xff] %v1311
        // Predicated region
        $region53: #{tpu_custom_call.1} parent=39 // pred_check
          %p1320 = pneg %p359
        $region54: #{tpu_custom_call.1} parent=39 // pred_check_branch
          %1322 = sbr.rel (%p1320) target = $region56
        $region55: #{tpu_custom_call.1} parent=39 // pred_region
          %v1323 = vld [vmem:[#allocation2] sm:$0xff]
          %v1324 = vld [vmem:[#allocation2 + $0x8] sm:$0xff]
          %v1325 = vld [vmem:[#allocation2 + $0x10] sm:$0xff]
          %v1326 = vld [vmem:[#allocation2 + $0x18] sm:$0xff]
          %v1327 = vld [vmem:[#allocation2 + $0x20] sm:$0xff]
          %v1328 = vld [vmem:[#allocation2 + $0x28] sm:$0xff]
          %v1329 = vld [vmem:[#allocation2 + $0x30] sm:$0xff]
          %v1330 = vld [vmem:[#allocation2 + $0x38] sm:$0xff]
          %1331 = vst [vmem:[%s335] sm:$0xff] %v1323
          %1332 = vst [vmem:[%s335 + $0x8] sm:$0xff] %v1324
          %1333 = vst [vmem:[%s335 + $0x10] sm:$0xff] %v1325
          %1334 = vst [vmem:[%s335 + $0x18] sm:$0xff] %v1326
          %1335 = vst [vmem:[%s335 + $0x20] sm:$0xff] %v1327
          %1336 = vst [vmem:[%s335 + $0x28] sm:$0xff] %v1328
          %1337 = vst [vmem:[%s335 + $0x30] sm:$0xff] %v1329
          %1338 = vst [vmem:[%s335 + $0x38] sm:$0xff] %v1330
        $region56: #{tpu_custom_call.1} parent=39 // pred_fallthru
          _
        %s1339 = sand.u32 %s181, 1
        %s1340 = scalar_lea.sflag [#allocation5], %s1339
        %s1341 = sand.u32 %s181, 1
        %s1342 = smul.addr %s1341, 64
        %s1343 = scalar_lea.vmem [#allocation8], %s1342
        // Predicated region
        $region57: #{tpu_custom_call.1} parent=39 // pred_check
          %p1344 = pneg %p191
        $region58: #{tpu_custom_call.1} parent=39 // pred_check_branch
          %1346 = sbr.rel (%p1344) target = $region60
        $region59: #{tpu_custom_call.1} parent=39 // pred_region
          %s1347 = smul.u32 8, %s29
          %s1349 = ssub.s32 1024, 1024
          %1350 = vsyncadd %s1340, %s1349
          %s1351 = smul.addr %s28, 8
          %s1352 = sadd.s32 %s1347, %s1351
          %s1353 = smul.addr %s1352, 128
          %s1354 = scalar_lea.hbm %s5, %s1353
          %s1355 = sshll.u32 %s1343, 4
          %s1356 = int_to_ptr.vmem [resolvable:$true] %s1355
          %1361 = dma.vmem_to_hbm [thread:$0]  %s1356, 1024, %s1354, %s1340, 128, 128, 8
        $region60: #{tpu_custom_call.1} parent=39 // pred_fallthru
          _
      $region40: #{tpu_custom_call.1} parent=5 // pred_fallthru
        _
      %p1362 = scmp.le.s32.totalorder 2, %s18
      // Predicated region
      $region61: #{tpu_custom_call.1} parent=5 // pred_check
        %p1363 = pneg %p1362
      $region62: #{tpu_custom_call.1} parent=5 // pred_check_branch
        %1365 = sbr.rel (%p1363) target = $region64
      $region63: #{tpu_custom_call.1} parent=5 // pred_region
        %s1366 = ssub.s32 %s18, 2
        // Predicated region
        $region65: #{tpu_custom_call.1} parent=63 // pred_check
          %p1367 = pneg %p197
        $region66: #{tpu_custom_call.1} parent=63 // pred_check_branch
          %1369 = sbr.rel (%p1367) target = $region68
        $region67: #{tpu_custom_call.1} parent=63 // pred_region
          %s1370 = sand.u32 %s182, 1
          %s1371 = scalar_lea.sflag [#allocation5], %s1370
          %s1372 = sand.u32 %s182, 1
          %s1373 = smul.addr %s1372, 64
          %s1374 = scalar_lea.vmem [#allocation8], %s1373
          %1375 = dma.done %s1371, 1024
        $region68: #{tpu_custom_call.1} parent=63 // pred_fallthru
          _
      $region64: #{tpu_custom_call.1} parent=5 // pred_fallthru
        _
    $region6: #{tpu_custom_call.1} parent=1 // loop_footer
      %s22 = sadd.s32 1, %s18
    $region7: #{tpu_custom_call.1} parent=1 // loop_footer_branch
      %17 = sbr.rel target = $region3
    $region8: #{tpu_custom_call.1} parent=1 // loop_exit
      _
    %1376 = vsyncpa [#allocation4], 1
    %s1377 = scalar_lea.sflag [#allocation4], 1
    %1378 = vsyncpa %s1377, 1
    %1379 = vsyncpa [#allocation5], 1
    %s1380 = scalar_lea.sflag [#allocation5], 1
    %1381 = vsyncpa %s1380, 1
    %1382 = vsyncpa [#allocation6], 1
    %s1383 = scalar_lea.sflag [#allocation6], 1
    %1384 = vsyncpa %s1383, 1

</llo_original>
